<compile_context>
chip_gen: v5e
topology: v5e:2x2
jax: 0.10.0
libtpu: 0.0.40
codegen_flags: <defaults>
</compile_context>

<pallas_src>
import functools

import jax
import jax.numpy as jnp
from jax import lax
from jax.experimental import pallas as pl
from jax.experimental.pallas import tpu as pltpu


def _round_up(x, m):
    return ((x + m - 1) // m) * m


# -----------------------------------------------------------------------------
# One-time parameter / plan preparation (hoisted out of the forward pass)
# -----------------------------------------------------------------------------
def build_plan(params, model_size_dict, *, group_conv=2, skip_connect=True,
               encoder_name='encode', decoder_name='decode'):
    """Build a static per-layer plan and a single packed weight slab.

    Every conv tap becomes one (C_pad, C_pad) matrix (zero-padded to the
    uniform channel width C_pad), stacked along sublanes into a single
    (T*C_pad, C_pad) f32 slab in kernel traversal order (conv-major,
    tap-minor).
    """
    c_max = max(max(cin, cout) for cin, cout, _ in model_size_dict.values())
    C_pad = _round_up(c_max, 8)          # sublane-aligned uniform channel width

    plan = []
    tap_ws = []
    prev_cout = None
    for layer_name, (cin, cout, k) in model_size_dict.items():
        lname = layer_name.lower()
        if encoder_name in lname or decoder_name in lname:
            names = [layer_name + '_Conv']
            relu, skip = True, False
        else:
            names = [f'{layer_name}_Conv{k}_{i}' for i in range(group_conv)]
            relu, skip = False, skip_connect

        if prev_cout is not None:
            assert cin == prev_cout, (
                f'{layer_name}: c_in={cin} != previous layer c_out={prev_cout}')
        if skip:
            assert cin == cout, f'{layer_name}: skip-connect requires c_in == c_out'
        prev_cout = cout

        for nm in names:
            w = jnp.asarray(params[nm], jnp.float32)        # (C_out, C_in, K)
            co, ci, kk = w.shape
            assert (co, ci, kk) == (cout, cin, k), (nm, w.shape)
            for tap in range(kk):
                wt = jnp.zeros((C_pad, C_pad), jnp.float32)
                wt = wt.at[:co, :ci].set(w[:, :, tap])
                tap_ws.append(wt)

        plan.append(dict(c_in=cin, c_out=cout, k=k, num_convs=len(names),
                         relu=relu, skip=skip))

    w_slab = jnp.concatenate(tap_ws, axis=0)                # (T*C_pad, C_pad)
    return plan, w_slab, C_pad


# -----------------------------------------------------------------------------
# Fused Pallas kernel: full autoencoder forward, all batch elements at once
# -----------------------------------------------------------------------------
def _make_fused_kernel(plan, L, NL, C_pad):
    def kernel(x_ref, w_ref, o_ref):
        x = x_ref[...]                                       # (C_pad, NL) f32

        # Boundary masks for 'same' padding. The lane axis carries batch*length,
        # so validity only depends on the within-example position (lane % L).
        # Cached per tap offset so each iota/compare is emitted exactly once.
        mask_cache = {}

        def boundary_mask(d):
            if d not in mask_cache:
                pos = lax.broadcasted_iota(jnp.int32, (C_pad, NL), 1) % L
                valid = jnp.logical_and(pos + d >= 0, pos + d < L)
                mask_cache[d] = valid.astype(jnp.float32)
            return mask_cache[d]

        t = 0  # running tap index into the weight slab
        for layer in plan:
            K = layer['k']
            pad_l = (K - 1) // 2          # matches PyTorch padding='same'

            # Shifted / masked activations, one per tap offset, shared by every
            # conv of this layer. pltpu.roll uses the otherwise-idle XLU slot;
            # the mask zeroes both per-example out-of-range taps and the
            # rotate wrap-around lanes.
            taps = []
            for k_idx in range(K):
                d = k_idx - pad_l
                if d == 0:
                    taps.append(x)
                else:
                    xr = pltpu.roll(x, shift=(-d) % NL, axis=1)
                    taps.append(xr * boundary_mask(d))

            acc = x if layer['skip'] else None
            for _ in range(layer['num_convs']):
                for k_idx in range(K):
                    w_tap = w_ref[pl.ds(t * C_pad, C_pad), :]   # (C_pad, C_pad)
                    contrib = jnp.dot(w_tap, taps[k_idx],
                                      preferred_element_type=jnp.float32)
                    acc = contrib if acc is None else acc + contrib
                    t += 1

            if layer['relu']:
                acc = jnp.maximum(acc, 0.0)
            x = acc

        o_ref[...] = x.astype(o_ref.dtype)                   # lane-dense store

    return kernel


def autoencoder_forward(x_ncl, w_slab, *, plan, C_pad):
    """x_ncl: (N, C0, L) in PyTorch NCL layout. Returns (N, C_last, L)."""
    N, C0, L = x_ncl.shape
    assert C0 == plan[0]['c_in'], (C0, plan[0]['c_in'])
    C_last = plan[-1]['c_out']
    NL = N * L

    # Layout prep (wrapper-side, cheap): channels on sublanes (zero-padded to
    # C_pad), batch*length on lanes -> one lane-dense (C_pad, N*L) slab.
    x2d = jnp.transpose(x_ncl, (1, 0, 2)).reshape(C0, NL)
    if C0 < C_pad:
        x2d = jnp.pad(x2d, ((0, C_pad - C0), (0, 0)))
    x2d = x2d.astype(jnp.float32)

    kernel = _make_fused_kernel(plan, L, NL, C_pad)
    # No grid: whole problem (all N batch elements, all layers) in one
    # invocation; inputs/outputs are whole-array VMEM refs.
    out2d = pl.pallas_call(
        kernel,
        out_shape=jax.ShapeDtypeStruct((C_pad, NL), jnp.float32),
    )(x2d, w_slab)

    out = out2d[:C_last].reshape(C_last, N, L).transpose(1, 0, 2)
    return out.astype(x_ncl.dtype)


# -----------------------------------------------------------------------------
# Pure-JAX reference (correctness check only; mirrors the module control flow)
# -----------------------------------------------------------------------------
def _conv1d_ref(x_ncl, w_oik):
    N, Cin, L = x_ncl.shape
    Cout, _, K = w_oik.shape
    pad_l = (K - 1) // 2
    pad_r = (K - 1) - pad_l
    xp = jnp.pad(x_ncl, ((0, 0), (0, 0), (pad_l, pad_r)))
    out = jnp.zeros((N, Cout, L), jnp.float32)
    for k in range(K):
        out = out + jnp.einsum('ncl,oc->nol', xp[:, :, k:k + L], w_oik[:, :, k])
    return out


def ref_forward(x_ncl, params, model_size_dict, *, group_conv=2,
                skip_connect=True):
    x = x_ncl
    for layer_name, (cin, cout, k) in model_size_dict.items():
        lname = layer_name.lower()
        if 'encode' in lname or 'decode' in lname:
            x = jnp.maximum(_conv1d_ref(x, params[layer_name + '_Conv']), 0.0)
        else:
            acc = x if skip_connect else jnp.zeros_like(x)
            for i in range(group_conv):
                acc = acc + _conv1d_ref(x, params[f'{layer_name}_Conv{k}_{i}'])
            x = acc
    return x


# -----------------------------------------------------------------------------
if __name__ == "__main__":
    # Small config consistent with the module:
    #   encode: Conv1d(4->8,k=3)+ReLU ; group: x + 2x Conv1d(8->8,k=3) ;
    #   decode: Conv1d(8->4,k=3)+ReLU
    MODEL_SIZE_DICT = {
        'encode_1':     [4, 8, 3],
        'latent_group': [8, 8, 3],
        'decode_1':     [8, 4, 3],
    }
    GROUP_CONV = 2
    SKIP_CONNECT = True
    # Batch folded into lanes: N*L = 512 lanes (multiple of 128 -> dense stores).
    N, C, L = 4, 4, 128

    key = jax.random.PRNGKey(0)
    params = {}
    for name, (cin, cout, k) in MODEL_SIZE_DICT.items():
        lname = name.lower()
        if 'encode' in lname or 'decode' in lname:
            key, sk = jax.random.split(key)
            params[name + '_Conv'] = 0.1 * jax.random.normal(
                sk, (cout, cin, k), jnp.float32)
        else:
            for i in range(GROUP_CONV):
                key, sk = jax.random.split(key)
                params[f'{name}_Conv{k}_{i}'] = 0.1 * jax.random.normal(
                    sk, (cout, cin, k), jnp.float32)

    key, sk = jax.random.split(key)
    x = jax.random.normal(sk, (N, C, L), jnp.float32)

    # One-time parameter prep (hoisted out of the forward pass).
    plan, w_slab, C_pad = build_plan(params, MODEL_SIZE_DICT,
                                     group_conv=GROUP_CONV,
                                     skip_connect=SKIP_CONNECT)

    fwd = jax.jit(functools.partial(autoencoder_forward, plan=plan, C_pad=C_pad))
    out = jax.block_until_ready(fwd(x, w_slab))

    ref = ref_forward(x, params, MODEL_SIZE_DICT,
                      group_conv=GROUP_CONV, skip_connect=SKIP_CONNECT)
    assert out.shape == (N, 4, L), out.shape
    assert jnp.allclose(out, ref, atol=1e-4, rtol=1e-4), "mismatch vs reference"

    print("KERNEL_OK")
</pallas_src>

<mosaic_0001>
module attributes {stable_mosaic.version = 11 : i64} {
  func.func @kernel(%arg0: memref<8x512xf32, #tpu.memory_space<vmem>>, %arg1: memref<96x8xf32, #tpu.memory_space<vmem>>, %arg2: memref<8x512xf32, #tpu.memory_space<vmem>>) attributes {dimension_semantics = [], scalar_prefetch = 0 : i64, scratch_operands = 0 : i64, tpu.core_type = #tpu.core_type<tc>} {
    %c0 = arith.constant 0 : index
    %c0_0 = arith.constant 0 : index
    %0 = vector.load %arg0[%c0, %c0_0] : memref<8x512xf32, #tpu.memory_space<vmem>>, vector<8x512xf32>
    %c1_i32 = arith.constant 1 : i32
    %1 = tpu.dynamic_rotate %0 by %c1_i32 dim 1 : vector<8x512xf32>, i32 -> vector<8x512xf32>
    %2 = tpu.iota {dimensions = array<i32: 1>} : vector<8x512xi32>
    %c128_i32 = arith.constant 128 : i32
    %c0_i32 = arith.constant 0 : i32
    %3 = arith.cmpi eq, %c128_i32, %c0_i32 : i32
    %c1_i32_1 = arith.constant 1 : i32
    %4 = arith.select %3, %c1_i32_1, %c128_i32 : i32
    %5 = vector.broadcast %4 : i32 to vector<8x512xi32>
    %6 = arith.remsi %2, %5 : vector<8x512xi32>
    %c0_i32_2 = arith.constant 0 : i32
    %7 = vector.broadcast %c0_i32_2 : i32 to vector<8x512xi32>
    %8 = arith.cmpi ne, %6, %7 : vector<8x512xi32>
    %c0_i32_3 = arith.constant 0 : i32
    %9 = vector.broadcast %c0_i32_3 : i32 to vector<8x512xi32>
    %10 = arith.cmpi slt, %6, %9 : vector<8x512xi32>
    %c0_i32_4 = arith.constant 0 : i32
    %11 = arith.cmpi slt, %4, %c0_i32_4 : i32
    %12 = vector.broadcast %11 : i1 to vector<8x512xi1>
    %13 = vector.broadcast %12 : vector<8x512xi1> to vector<8x512xi1>
    %14 = arith.xori %10, %13 : vector<8x512xi1>
    %15 = arith.andi %14, %8 : vector<8x512xi1>
    %16 = vector.broadcast %4 : i32 to vector<8x512xi32>
    %17 = arith.addi %6, %16 : vector<8x512xi32>
    %18 = arith.select %15, %17, %6 : vector<8x512xi1>, vector<8x512xi32>
    %c-1_i32 = arith.constant -1 : i32
    %19 = vector.broadcast %c-1_i32 : i32 to vector<8x512xi32>
    %20 = arith.addi %18, %19 : vector<8x512xi32>
    %c0_i32_5 = arith.constant 0 : i32
    %21 = vector.broadcast %c0_i32_5 : i32 to vector<8x512xi32>
    %22 = arith.cmpi sge, %20, %21 : vector<8x512xi32>
    %c-1_i32_6 = arith.constant -1 : i32
    %23 = vector.broadcast %c-1_i32_6 : i32 to vector<8x512xi32>
    %24 = arith.addi %18, %23 : vector<8x512xi32>
    %c128_i32_7 = arith.constant 128 : i32
    %25 = vector.broadcast %c128_i32_7 : i32 to vector<8x512xi32>
    %26 = arith.cmpi slt, %24, %25 : vector<8x512xi32>
    %27 = arith.andi %22, %26 : vector<8x512xi1>
    %28 = arith.extui %27 : vector<8x512xi1> to vector<8x512xi32>
    %29 = arith.sitofp %28 : vector<8x512xi32> to vector<8x512xf32>
    %30 = arith.mulf %1, %29 : vector<8x512xf32>
    %c511_i32 = arith.constant 511 : i32
    %31 = tpu.dynamic_rotate %0 by %c511_i32 dim 1 : vector<8x512xf32>, i32 -> vector<8x512xf32>
    %32 = tpu.iota {dimensions = array<i32: 1>} : vector<8x512xi32>
    %c128_i32_8 = arith.constant 128 : i32
    %c0_i32_9 = arith.constant 0 : i32
    %33 = arith.cmpi eq, %c128_i32_8, %c0_i32_9 : i32
    %c1_i32_10 = arith.constant 1 : i32
    %34 = arith.select %33, %c1_i32_10, %c128_i32_8 : i32
    %35 = vector.broadcast %34 : i32 to vector<8x512xi32>
    %36 = arith.remsi %32, %35 : vector<8x512xi32>
    %c0_i32_11 = arith.constant 0 : i32
    %37 = vector.broadcast %c0_i32_11 : i32 to vector<8x512xi32>
    %38 = arith.cmpi ne, %36, %37 : vector<8x512xi32>
    %c0_i32_12 = arith.constant 0 : i32
    %39 = vector.broadcast %c0_i32_12 : i32 to vector<8x512xi32>
    %40 = arith.cmpi slt, %36, %39 : vector<8x512xi32>
    %c0_i32_13 = arith.constant 0 : i32
    %41 = arith.cmpi slt, %34, %c0_i32_13 : i32
    %42 = vector.broadcast %41 : i1 to vector<8x512xi1>
    %43 = vector.broadcast %42 : vector<8x512xi1> to vector<8x512xi1>
    %44 = arith.xori %40, %43 : vector<8x512xi1>
    %45 = arith.andi %44, %38 : vector<8x512xi1>
    %46 = vector.broadcast %34 : i32 to vector<8x512xi32>
    %47 = arith.addi %36, %46 : vector<8x512xi32>
    %48 = arith.select %45, %47, %36 : vector<8x512xi1>, vector<8x512xi32>
    %c1_i32_14 = arith.constant 1 : i32
    %49 = vector.broadcast %c1_i32_14 : i32 to vector<8x512xi32>
    %50 = arith.addi %48, %49 : vector<8x512xi32>
    %c0_i32_15 = arith.constant 0 : i32
    %51 = vector.broadcast %c0_i32_15 : i32 to vector<8x512xi32>
    %52 = arith.cmpi sge, %50, %51 : vector<8x512xi32>
    %c1_i32_16 = arith.constant 1 : i32
    %53 = vector.broadcast %c1_i32_16 : i32 to vector<8x512xi32>
    %54 = arith.addi %48, %53 : vector<8x512xi32>
    %c128_i32_17 = arith.constant 128 : i32
    %55 = vector.broadcast %c128_i32_17 : i32 to vector<8x512xi32>
    %56 = arith.cmpi slt, %54, %55 : vector<8x512xi32>
    %57 = arith.andi %52, %56 : vector<8x512xi1>
    %58 = arith.extui %57 : vector<8x512xi1> to vector<8x512xi32>
    %59 = arith.sitofp %58 : vector<8x512xi32> to vector<8x512xf32>
    %60 = arith.mulf %31, %59 : vector<8x512xf32>
    %c0_18 = arith.constant 0 : index
    %c0_19 = arith.constant 0 : index
    %61 = vector.load %arg1[%c0_18, %c0_19] : memref<96x8xf32, #tpu.memory_space<vmem>>, vector<8x8xf32>
    %cst = arith.constant dense<0.000000e+00> : vector<8x512xf32>
    %62 = tpu.matmul %61, %30, %cst {dimension_numbers = #tpu.dot_dimension_numbers<[1], [0], [0], [1], [0, 0, 1, 1], [], []>} : vector<8x8xf32>, vector<8x512xf32>, vector<8x512xf32> -> vector<8x512xf32>
    %c8 = arith.constant 8 : index
    %c0_20 = arith.constant 0 : index
    %63 = vector.load %arg1[%c8, %c0_20] : memref<96x8xf32, #tpu.memory_space<vmem>>, vector<8x8xf32>
    %cst_21 = arith.constant dense<0.000000e+00> : vector<8x512xf32>
    %64 = tpu.matmul %63, %0, %cst_21 {dimension_numbers = #tpu.dot_dimension_numbers<[1], [0], [0], [1], [0, 0, 1, 1], [], []>} : vector<8x8xf32>, vector<8x512xf32>, vector<8x512xf32> -> vector<8x512xf32>
    %65 = arith.addf %62, %64 : vector<8x512xf32>
    %c16 = arith.constant 16 : index
    %c0_22 = arith.constant 0 : index
    %66 = vector.load %arg1[%c16, %c0_22] : memref<96x8xf32, #tpu.memory_space<vmem>>, vector<8x8xf32>
    %cst_23 = arith.constant dense<0.000000e+00> : vector<8x512xf32>
    %67 = tpu.matmul %66, %60, %cst_23 {dimension_numbers = #tpu.dot_dimension_numbers<[1], [0], [0], [1], [0, 0, 1, 1], [], []>} : vector<8x8xf32>, vector<8x512xf32>, vector<8x512xf32> -> vector<8x512xf32>
    %68 = arith.addf %65, %67 : vector<8x512xf32>
    %cst_24 = arith.constant 0.000000e+00 : f32
    %69 = vector.broadcast %cst_24 : f32 to vector<8x512xf32>
    %70 = arith.maximumf %68, %69 : vector<8x512xf32>
    %c1_i32_25 = arith.constant 1 : i32
    %71 = tpu.dynamic_rotate %70 by %c1_i32_25 dim 1 : vector<8x512xf32>, i32 -> vector<8x512xf32>
    %72 = arith.mulf %71, %29 : vector<8x512xf32>
    %c511_i32_26 = arith.constant 511 : i32
    %73 = tpu.dynamic_rotate %70 by %c511_i32_26 dim 1 : vector<8x512xf32>, i32 -> vector<8x512xf32>
    %74 = arith.mulf %73, %59 : vector<8x512xf32>
    %c24 = arith.constant 24 : index
    %c0_27 = arith.constant 0 : index
    %75 = vector.load %arg1[%c24, %c0_27] : memref<96x8xf32, #tpu.memory_space<vmem>>, vector<8x8xf32>
    %cst_28 = arith.constant dense<0.000000e+00> : vector<8x512xf32>
    %76 = tpu.matmul %75, %72, %cst_28 {dimension_numbers = #tpu.dot_dimension_numbers<[1], [0], [0], [1], [0, 0, 1, 1], [], []>} : vector<8x8xf32>, vector<8x512xf32>, vector<8x512xf32> -> vector<8x512xf32>
    %77 = arith.addf %70, %76 : vector<8x512xf32>
    %c32 = arith.constant 32 : index
    %c0_29 = arith.constant 0 : index
    %78 = vector.load %arg1[%c32, %c0_29] : memref<96x8xf32, #tpu.memory_space<vmem>>, vector<8x8xf32>
    %cst_30 = arith.constant dense<0.000000e+00> : vector<8x512xf32>
    %79 = tpu.matmul %78, %70, %cst_30 {dimension_numbers = #tpu.dot_dimension_numbers<[1], [0], [0], [1], [0, 0, 1, 1], [], []>} : vector<8x8xf32>, vector<8x512xf32>, vector<8x512xf32> -> vector<8x512xf32>
    %80 = arith.addf %77, %79 : vector<8x512xf32>
    %c40 = arith.constant 40 : index
    %c0_31 = arith.constant 0 : index
    %81 = vector.load %arg1[%c40, %c0_31] : memref<96x8xf32, #tpu.memory_space<vmem>>, vector<8x8xf32>
    %cst_32 = arith.constant dense<0.000000e+00> : vector<8x512xf32>
    %82 = tpu.matmul %81, %74, %cst_32 {dimension_numbers = #tpu.dot_dimension_numbers<[1], [0], [0], [1], [0, 0, 1, 1], [], []>} : vector<8x8xf32>, vector<8x512xf32>, vector<8x512xf32> -> vector<8x512xf32>
    %83 = arith.addf %80, %82 : vector<8x512xf32>
    %c48 = arith.constant 48 : index
    %c0_33 = arith.constant 0 : index
    %84 = vector.load %arg1[%c48, %c0_33] : memref<96x8xf32, #tpu.memory_space<vmem>>, vector<8x8xf32>
    %cst_34 = arith.constant dense<0.000000e+00> : vector<8x512xf32>
    %85 = tpu.matmul %84, %72, %cst_34 {dimension_numbers = #tpu.dot_dimension_numbers<[1], [0], [0], [1], [0, 0, 1, 1], [], []>} : vector<8x8xf32>, vector<8x512xf32>, vector<8x512xf32> -> vector<8x512xf32>
    %86 = arith.addf %83, %85 : vector<8x512xf32>
    %c56 = arith.constant 56 : index
    %c0_35 = arith.constant 0 : index
    %87 = vector.load %arg1[%c56, %c0_35] : memref<96x8xf32, #tpu.memory_space<vmem>>, vector<8x8xf32>
    %cst_36 = arith.constant dense<0.000000e+00> : vector<8x512xf32>
    %88 = tpu.matmul %87, %70, %cst_36 {dimension_numbers = #tpu.dot_dimension_numbers<[1], [0], [0], [1], [0, 0, 1, 1], [], []>} : vector<8x8xf32>, vector<8x512xf32>, vector<8x512xf32> -> vector<8x512xf32>
    %89 = arith.addf %86, %88 : vector<8x512xf32>
    %c64 = arith.constant 64 : index
    %c0_37 = arith.constant 0 : index
    %90 = vector.load %arg1[%c64, %c0_37] : memref<96x8xf32, #tpu.memory_space<vmem>>, vector<8x8xf32>
    %cst_38 = arith.constant dense<0.000000e+00> : vector<8x512xf32>
    %91 = tpu.matmul %90, %74, %cst_38 {dimension_numbers = #tpu.dot_dimension_numbers<[1], [0], [0], [1], [0, 0, 1, 1], [], []>} : vector<8x8xf32>, vector<8x512xf32>, vector<8x512xf32> -> vector<8x512xf32>
    %92 = arith.addf %89, %91 : vector<8x512xf32>
    %c1_i32_39 = arith.constant 1 : i32
    %93 = tpu.dynamic_rotate %92 by %c1_i32_39 dim 1 : vector<8x512xf32>, i32 -> vector<8x512xf32>
    %94 = arith.mulf %93, %29 : vector<8x512xf32>
    %c511_i32_40 = arith.constant 511 : i32
    %95 = tpu.dynamic_rotate %92 by %c511_i32_40 dim 1 : vector<8x512xf32>, i32 -> vector<8x512xf32>
    %96 = arith.mulf %95, %59 : vector<8x512xf32>
    %c72 = arith.constant 72 : index
    %c0_41 = arith.constant 0 : index
    %97 = vector.load %arg1[%c72, %c0_41] : memref<96x8xf32, #tpu.memory_space<vmem>>, vector<8x8xf32>
    %cst_42 = arith.constant dense<0.000000e+00> : vector<8x512xf32>
    %98 = tpu.matmul %97, %94, %cst_42 {dimension_numbers = #tpu.dot_dimension_numbers<[1], [0], [0], [1], [0, 0, 1, 1], [], []>} : vector<8x8xf32>, vector<8x512xf32>, vector<8x512xf32> -> vector<8x512xf32>
    %c80 = arith.constant 80 : index
    %c0_43 = arith.constant 0 : index
    %99 = vector.load %arg1[%c80, %c0_43] : memref<96x8xf32, #tpu.memory_space<vmem>>, vector<8x8xf32>
    %cst_44 = arith.constant dense<0.000000e+00> : vector<8x512xf32>
    %100 = tpu.matmul %99, %92, %cst_44 {dimension_numbers = #tpu.dot_dimension_numbers<[1], [0], [0], [1], [0, 0, 1, 1], [], []>} : vector<8x8xf32>, vector<8x512xf32>, vector<8x512xf32> -> vector<8x512xf32>
    %101 = arith.addf %98, %100 : vector<8x512xf32>
    %c88 = arith.constant 88 : index
    %c0_45 = arith.constant 0 : index
    %102 = vector.load %arg1[%c88, %c0_45] : memref<96x8xf32, #tpu.memory_space<vmem>>, vector<8x8xf32>
    %cst_46 = arith.constant dense<0.000000e+00> : vector<8x512xf32>
    %103 = tpu.matmul %102, %96, %cst_46 {dimension_numbers = #tpu.dot_dimension_numbers<[1], [0], [0], [1], [0, 0, 1, 1], [], []>} : vector<8x8xf32>, vector<8x512xf32>, vector<8x512xf32> -> vector<8x512xf32>
    %104 = arith.addf %101, %103 : vector<8x512xf32>
    %cst_47 = arith.constant 0.000000e+00 : f32
    %105 = vector.broadcast %cst_47 : f32 to vector<8x512xf32>
    %106 = arith.maximumf %104, %105 : vector<8x512xf32>
    %c0_48 = arith.constant 0 : index
    %c0_49 = arith.constant 0 : index
    %107 = vector.load %arg2[%c0_48, %c0_49] : memref<8x512xf32, #tpu.memory_space<vmem>>, vector<8x512xf32>
    tpu.vector_store %arg2[%c0_48, %c0_49], %106 {strides = array<i32>} : memref<8x512xf32, #tpu.memory_space<vmem>>, vector<8x512xf32>,
    return
  }
}

</mosaic_0001>

<llo_original>
// kernel: autoencoder_forward.1
$region0: #{autoencoder_forward.1}
  #allocation0 [shape = 'u32[]', space=smem, size = 0x4, offset = 0x4, fixed_abs, tag = 'smem constant byte address 0x4 - core index']
  #allocation1 [shape = 'u32[72,128]{1,0:T(1,128)}', space=vmem, size = 0x9000, scoped, tag = 'internal scratch']
  %s0 = inlined_call_operand.vmem [shape: f32[8,512], index: 0, kind: input, shape index: {}]
  %s1 = inlined_call_operand.vmem [shape: f32[96,8], index: 1, kind: input, shape index: {}]
  %s2 = inlined_call_operand.vmem [shape: f32[8,512], index: 2, kind: output, shape index: {}]
  %s3 = sld [smem:[#allocation0]]
  $region18: #{autoencoder_forward.1} parent=0
    _
  %s5 = ssub.s32 1, %s3
  %s6 = scalar_select 0, %s5, %s3
  // Predicated region
  $region2: #{autoencoder_forward.1} parent=0 // pred_check
    _
  $region3: #{autoencoder_forward.1} parent=0 // pred_check_branch
    %8 = sbr.rel (0) target = $region5
  $region4: #{autoencoder_forward.1} parent=0 // pred_region
    _
  $region5: #{autoencoder_forward.1} parent=0 // pred_fallthru
    _
  // Predicated region
  $region6: #{autoencoder_forward.1} parent=0 // pred_check
    _
  $region7: #{autoencoder_forward.1} parent=0 // pred_check_branch
    %10 = sbr.rel (0) target = $region9
  $region8: #{autoencoder_forward.1} parent=0 // pred_region
    _
  $region9: #{autoencoder_forward.1} parent=0 // pred_fallthru
    _
  %v11 = vld [vmem:[%s0] sm:$0xff]
  %v12 = vld [vmem:[%s0 + $0x8] sm:$0xff]
  %v13 = vld [vmem:[%s0 + $0x10] sm:$0xff]
  %v14 = vld [vmem:[%s0 + $0x18] sm:$0xff]
  %15 = vrot.lane.b32.xlu0 %v11, 1
  %v16 = vpop.permute.xlu0 %15
  %17 = vrot.lane.b32.xlu0 %v12, 1
  %v18 = vpop.permute.xlu0 %17
  %19 = vrot.lane.b32.xlu0 %v13, 1
  %v20 = vpop.permute.xlu0 %19
  %21 = vrot.lane.b32.xlu0 %v14, 1
  %v22 = vpop.permute.xlu0 %21
  %v23 = vlaneseq
  %v24 = vand.u32 %v23, 127
  %vm25 = vcmp.lt.s32.totalorder %v24, 1
  %v26 = vsel %vm25, %v20, %v22
  %v27 = vsel %vm25, %v18, %v20
  %v28 = vsel %vm25, %v16, %v18
  %v29 = vsel %vm25, %v22, %v16
  %v30 = vadd.s32 %v24, 128
  %v31 = vadd.s32 %v24, 256
  %v32 = vadd.s32 %v24, 384
  %vm33 = vcmp.lt.s32.totalorder %v24, 0
  %v34 = vsub.s32 0, %v24
  %v35 = vsel %vm33, %v34, %v24
  %v36 = vshrl.u32 %v35, 7
  %v37 = vand.u32 %v35, 127
  %v38 = vsub.s32 0, %v37
  %v39 = vsel %vm33, %v38, %v37
  %vm40 = vcmp.lt.s32.totalorder %v30, 0
  %v41 = vsub.s32 0, %v30
  %v42 = vsel %vm40, %v41, %v30
  %v43 = vshrl.u32 %v42, 7
  %v44 = vand.u32 %v42, 127
  %v45 = vsub.s32 0, %v44
  %v46 = vsel %vm40, %v45, %v44
  %vm47 = vcmp.lt.s32.totalorder %v31, 0
  %v48 = vsub.s32 0, %v31
  %v49 = vsel %vm47, %v48, %v31
  %v50 = vshrl.u32 %v49, 7
  %v51 = vand.u32 %v49, 127
  %v52 = vsub.s32 0, %v51
  %v53 = vsel %vm47, %v52, %v51
  %vm54 = vcmp.lt.s32.totalorder %v32, 0
  %v55 = vsub.s32 0, %v32
  %v56 = vsel %vm54, %v55, %v32
  %v57 = vshrl.u32 %v56, 7
  %v58 = vand.u32 %v56, 127
  %v59 = vsub.s32 0, %v58
  %v60 = vsel %vm54, %v59, %v58
  %vm61 = vcmp.ne.s32.totalorder %v39, 0
  %vm62 = vcmp.ne.s32.totalorder %v46, 0
  %vm63 = vcmp.ne.s32.totalorder %v53, 0
  %vm64 = vcmp.ne.s32.totalorder %v60, 0
  %vm65 = vcmp.lt.s32.totalorder %v39, 0
  %vm66 = vcmp.lt.s32.totalorder %v46, 0
  %vm67 = vcmp.lt.s32.totalorder %v53, 0
  %vm68 = vcmp.lt.s32.totalorder %v60, 0
  %vm69 = vmand %vm65, %vm61
  %vm70 = vmand %vm66, %vm62
  %vm71 = vmand %vm67, %vm63
  %vm72 = vmand %vm68, %vm64
  %v73 = vadd.s32 %v39, 128
  %v74 = vadd.s32 %v46, 128
  %v75 = vadd.s32 %v53, 128
  %v76 = vadd.s32 %v60, 128
  %v77 = vsel %vm69, %v73, %v39
  %v78 = vsel %vm70, %v74, %v46
  %v79 = vsel %vm71, %v75, %v53
  %v80 = vsel %vm72, %v76, %v60
  %v81 = vadd.s32 %v77, 4294967295
  %v82 = vadd.s32 %v78, 4294967295
  %v83 = vadd.s32 %v79, 4294967295
  %v84 = vadd.s32 %v80, 4294967295
  %vm85 = vcmp.ge.s32.totalorder %v81, 0
  %vm86 = vcmp.ge.s32.totalorder %v82, 0
  %vm87 = vcmp.ge.s32.totalorder %v83, 0
  %vm88 = vcmp.ge.s32.totalorder %v84, 0
  %vm89 = vcmp.lt.s32.totalorder %v81, 128
  %vm90 = vcmp.lt.s32.totalorder %v82, 128
  %vm91 = vcmp.lt.s32.totalorder %v83, 128
  %vm92 = vcmp.lt.s32.totalorder %v84, 128
  %vm93 = vmand %vm85, %vm89
  %vm94 = vmand %vm86, %vm90
  %vm95 = vmand %vm87, %vm91
  %vm96 = vmand %vm88, %vm92
  %v97 = vsel %vm93, 1, 0
  %v98 = vsel %vm94, 1, 0
  %v99 = vsel %vm95, 1, 0
  %v100 = vsel %vm96, 1, 0
  %v101 = vcvt.s32.f32 %v97
  %v102 = vcvt.s32.f32 %v98
  %v103 = vcvt.s32.f32 %v99
  %v104 = vcvt.s32.f32 %v100
  %v105 = vmul.f32 %v29, %v101
  %v106 = vmul.f32 %v28, %v102
  %v107 = vmul.f32 %v27, %v103
  %v108 = vmul.f32 %v26, %v104
  %109 = vrot.lane.b32.xlu0 %v11, 127
  %v110 = vpop.permute.xlu0 %109
  %111 = vrot.lane.b32.xlu0 %v12, 127
  %v112 = vpop.permute.xlu0 %111
  %113 = vrot.lane.b32.xlu0 %v13, 127
  %v114 = vpop.permute.xlu0 %113
  %115 = vrot.lane.b32.xlu0 %v14, 127
  %v116 = vpop.permute.xlu0 %115
  %vm117 = vcmp.lt.s32.totalorder %v24, 127
  %v118 = vsel %vm117, %v114, %v116
  %v119 = vsel %vm117, %v112, %v114
  %v120 = vsel %vm117, %v110, %v112
  %v121 = vsel %vm117, %v116, %v110
  %v122 = vadd.s32 %v77, 1
  %v123 = vadd.s32 %v78, 1
  %v124 = vadd.s32 %v79, 1
  %v125 = vadd.s32 %v80, 1
  %vm126 = vcmp.ge.s32.totalorder %v122, 0
  %vm127 = vcmp.ge.s32.totalorder %v123, 0
  %vm128 = vcmp.ge.s32.totalorder %v124, 0
  %vm129 = vcmp.ge.s32.totalorder %v125, 0
  %vm130 = vcmp.lt.s32.totalorder %v122, 128
  %vm131 = vcmp.lt.s32.totalorder %v123, 128
  %vm132 = vcmp.lt.s32.totalorder %v124, 128
  %vm133 = vcmp.lt.s32.totalorder %v125, 128
  %vm134 = vmand %vm126, %vm130
  %vm135 = vmand %vm127, %vm131
  %vm136 = vmand %vm128, %vm132
  %vm137 = vmand %vm129, %vm133
  %v138 = vsel %vm134, 1, 0
  %v139 = vsel %vm135, 1, 0
  %v140 = vsel %vm136, 1, 0
  %v141 = vsel %vm137, 1, 0
  %v142 = vcvt.s32.f32 %v138
  %v143 = vcvt.s32.f32 %v139
  %v144 = vcvt.s32.f32 %v140
  %v145 = vcvt.s32.f32 %v141
  %v146 = vmul.f32 %v120, %v142
  %v147 = vmul.f32 %v119, %v143
  %v148 = vmul.f32 %v118, %v144
  %v149 = vmul.f32 %v121, %v145
  %v150 = vld [vmem:[%s1] sm:$0xff]
  %v151 = vld [vmem:[%s1 + $0x8] sm:$0xff]
  %vm152 = vcmask 64512
  %v154 = vsel %vm152, %v151, 0
  %156 = vmatpush.msra.mxu0 0.0
  %157 = vmatpush.msra.mxu0 0.0
  %158 = vmatpush.msra.mxu0 0.0
  %159 = vmatpush.msra.mxu0 0.0
  %160 = vmatpush.msra.mxu0 0.0
  %161 = vmatpush.msra.mxu0 0.0
  %162 = vmatpush.msra.mxu0 0.0
  %163 = vmatpush.msra.mxu0 0.0
  %164 = vmatpush.msra.mxu0 0.0
  %165 = vmatpush.msra.mxu0 0.0
  %166 = vmatpush.msra.mxu0 0.0
  %167 = vmatpush.msra.mxu0 0.0
  %168 = vmatpush.msra.mxu0 0.0
  %169 = vmatpush.msra.mxu0 0.0
  %170 = vmatpush.msra.mxu0 0.0
  %171 = vmatpush.msra.mxu0 %v11
  %172 = vmatmul.f32.gmra.mxu0 %v154
  %v173 = vpop.f32.mrf.mxu0
  %v174 = vadd.f32 0.0, %v173
  %175 = vdwg.mxu0
  %176 = vmatpush.msra.mxu0 0.0
  %177 = vmatpush.msra.mxu0 0.0
  %178 = vmatpush.msra.mxu0 0.0
  %179 = vmatpush.msra.mxu0 0.0
  %180 = vmatpush.msra.mxu0 0.0
  %181 = vmatpush.msra.mxu0 0.0
  %182 = vmatpush.msra.mxu0 0.0
  %183 = vmatpush.msra.mxu0 0.0
  %184 = vmatpush.msra.mxu0 0.0
  %185 = vmatpush.msra.mxu0 0.0
  %186 = vmatpush.msra.mxu0 0.0
  %187 = vmatpush.msra.mxu0 0.0
  %188 = vmatpush.msra.mxu0 0.0
  %189 = vmatpush.msra.mxu0 0.0
  %190 = vmatpush.msra.mxu0 0.0
  %191 = vmatpush.msra.mxu0 %v12
  %192 = vmatmul.f32.gmra.mxu0 %v154
  %v193 = vpop.f32.mrf.mxu0
  %v194 = vadd.f32 0.0, %v193
  %195 = vdwg.mxu0
  %196 = vmatpush.msra.mxu0 0.0
  %197 = vmatpush.msra.mxu0 0.0
  %198 = vmatpush.msra.mxu0 0.0
  %199 = vmatpush.msra.mxu0 0.0
  %200 = vmatpush.msra.mxu0 0.0
  %201 = vmatpush.msra.mxu0 0.0
  %202 = vmatpush.msra.mxu0 0.0
  %203 = vmatpush.msra.mxu0 0.0
  %204 = vmatpush.msra.mxu0 0.0
  %205 = vmatpush.msra.mxu0 0.0
  %206 = vmatpush.msra.mxu0 0.0
  %207 = vmatpush.msra.mxu0 0.0
  %208 = vmatpush.msra.mxu0 0.0
  %209 = vmatpush.msra.mxu0 0.0
  %210 = vmatpush.msra.mxu0 0.0
  %211 = vmatpush.msra.mxu0 %v13
  %212 = vmatmul.f32.gmra.mxu0 %v154
  %v213 = vpop.f32.mrf.mxu0
  %v214 = vadd.f32 0.0, %v213
  %215 = vdwg.mxu0
  %216 = vmatpush.msra.mxu0 0.0
  %217 = vmatpush.msra.mxu0 0.0
  %218 = vmatpush.msra.mxu0 0.0
  %219 = vmatpush.msra.mxu0 0.0
  %220 = vmatpush.msra.mxu0 0.0
  %221 = vmatpush.msra.mxu0 0.0
  %222 = vmatpush.msra.mxu0 0.0
  %223 = vmatpush.msra.mxu0 0.0
  %224 = vmatpush.msra.mxu0 0.0
  %225 = vmatpush.msra.mxu0 0.0
  %226 = vmatpush.msra.mxu0 0.0
  %227 = vmatpush.msra.mxu0 0.0
  %228 = vmatpush.msra.mxu0 0.0
  %229 = vmatpush.msra.mxu0 0.0
  %230 = vmatpush.msra.mxu0 0.0
  %231 = vmatpush.msra.mxu0 %v14
  %232 = vmatmul.f32.gmra.mxu0 %v154
  %v233 = vpop.f32.mrf.mxu0
  %v234 = vadd.f32 0.0, %v233
  %235 = vdwg.mxu0
  %v237 = vsel %vm152, %v150, 0
  %239 = vmatpush.msra.mxu0 0.0
  %240 = vmatpush.msra.mxu0 0.0
  %241 = vmatpush.msra.mxu0 0.0
  %242 = vmatpush.msra.mxu0 0.0
  %243 = vmatpush.msra.mxu0 0.0
  %244 = vmatpush.msra.mxu0 0.0
  %245 = vmatpush.msra.mxu0 0.0
  %246 = vmatpush.msra.mxu0 0.0
  %247 = vmatpush.msra.mxu0 0.0
  %248 = vmatpush.msra.mxu0 0.0
  %249 = vmatpush.msra.mxu0 0.0
  %250 = vmatpush.msra.mxu0 0.0
  %251 = vmatpush.msra.mxu0 0.0
  %252 = vmatpush.msra.mxu0 0.0
  %253 = vmatpush.msra.mxu0 0.0
  %254 = vmatpush.msra.mxu0 %v105
  %255 = vmatmul.f32.gmra.mxu0 %v237
  %v256 = vpop.f32.mrf.mxu0
  %v257 = vadd.f32 %v174, %v256
  %258 = vdwg.mxu0
  %259 = vmatpush.msra.mxu0 0.0
  %260 = vmatpush.msra.mxu0 0.0
  %261 = vmatpush.msra.mxu0 0.0
  %262 = vmatpush.msra.mxu0 0.0
  %263 = vmatpush.msra.mxu0 0.0
  %264 = vmatpush.msra.mxu0 0.0
  %265 = vmatpush.msra.mxu0 0.0
  %266 = vmatpush.msra.mxu0 0.0
  %267 = vmatpush.msra.mxu0 0.0
  %268 = vmatpush.msra.mxu0 0.0
  %269 = vmatpush.msra.mxu0 0.0
  %270 = vmatpush.msra.mxu0 0.0
  %271 = vmatpush.msra.mxu0 0.0
  %272 = vmatpush.msra.mxu0 0.0
  %273 = vmatpush.msra.mxu0 0.0
  %274 = vmatpush.msra.mxu0 %v106
  %275 = vmatmul.f32.gmra.mxu0 %v237
  %v276 = vpop.f32.mrf.mxu0
  %v277 = vadd.f32 %v194, %v276
  %278 = vdwg.mxu0
  %279 = vmatpush.msra.mxu0 0.0
  %280 = vmatpush.msra.mxu0 0.0
  %281 = vmatpush.msra.mxu0 0.0
  %282 = vmatpush.msra.mxu0 0.0
  %283 = vmatpush.msra.mxu0 0.0
  %284 = vmatpush.msra.mxu0 0.0
  %285 = vmatpush.msra.mxu0 0.0
  %286 = vmatpush.msra.mxu0 0.0
  %287 = vmatpush.msra.mxu0 0.0
  %288 = vmatpush.msra.mxu0 0.0
  %289 = vmatpush.msra.mxu0 0.0
  %290 = vmatpush.msra.mxu0 0.0
  %291 = vmatpush.msra.mxu0 0.0
  %292 = vmatpush.msra.mxu0 0.0
  %293 = vmatpush.msra.mxu0 0.0
  %294 = vmatpush.msra.mxu0 %v107
  %295 = vmatmul.f32.gmra.mxu0 %v237
  %v296 = vpop.f32.mrf.mxu0
  %v297 = vadd.f32 %v214, %v296
  %298 = vdwg.mxu0
  %299 = vmatpush.msra.mxu0 0.0
  %300 = vmatpush.msra.mxu0 0.0
  %301 = vmatpush.msra.mxu0 0.0
  %302 = vmatpush.msra.mxu0 0.0
  %303 = vmatpush.msra.mxu0 0.0
  %304 = vmatpush.msra.mxu0 0.0
  %305 = vmatpush.msra.mxu0 0.0
  %306 = vmatpush.msra.mxu0 0.0
  %307 = vmatpush.msra.mxu0 0.0
  %308 = vmatpush.msra.mxu0 0.0
  %309 = vmatpush.msra.mxu0 0.0
  %310 = vmatpush.msra.mxu0 0.0
  %311 = vmatpush.msra.mxu0 0.0
  %312 = vmatpush.msra.mxu0 0.0
  %313 = vmatpush.msra.mxu0 0.0
  %314 = vmatpush.msra.mxu0 %v108
  %315 = vmatmul.f32.gmra.mxu0 %v237
  %v316 = vpop.f32.mrf.mxu0
  %v317 = vadd.f32 %v234, %v316
  %318 = vdwg.mxu0
  %v319 = vld [vmem:[%s1 + $0x10] sm:$0xff]
  %v321 = vsel %vm152, %v319, 0
  %323 = vmatpush.msra.mxu0 0.0
  %324 = vmatpush.msra.mxu0 0.0
  %325 = vmatpush.msra.mxu0 0.0
  %326 = vmatpush.msra.mxu0 0.0
  %327 = vmatpush.msra.mxu0 0.0
  %328 = vmatpush.msra.mxu0 0.0
  %329 = vmatpush.msra.mxu0 0.0
  %330 = vmatpush.msra.mxu0 0.0
  %331 = vmatpush.msra.mxu0 0.0
  %332 = vmatpush.msra.mxu0 0.0
  %333 = vmatpush.msra.mxu0 0.0
  %334 = vmatpush.msra.mxu0 0.0
  %335 = vmatpush.msra.mxu0 0.0
  %336 = vmatpush.msra.mxu0 0.0
  %337 = vmatpush.msra.mxu0 0.0
  %338 = vmatpush.msra.mxu0 %v146
  %339 = vmatmul.f32.gmra.mxu0 %v321
  %v340 = vpop.f32.mrf.mxu0
  %v341 = vadd.f32 0.0, %v340
  %342 = vdwg.mxu0
  %343 = vmatpush.msra.mxu0 0.0
  %344 = vmatpush.msra.mxu0 0.0
  %345 = vmatpush.msra.mxu0 0.0
  %346 = vmatpush.msra.mxu0 0.0
  %347 = vmatpush.msra.mxu0 0.0
  %348 = vmatpush.msra.mxu0 0.0
  %349 = vmatpush.msra.mxu0 0.0
  %350 = vmatpush.msra.mxu0 0.0
  %351 = vmatpush.msra.mxu0 0.0
  %352 = vmatpush.msra.mxu0 0.0
  %353 = vmatpush.msra.mxu0 0.0
  %354 = vmatpush.msra.mxu0 0.0
  %355 = vmatpush.msra.mxu0 0.0
  %356 = vmatpush.msra.mxu0 0.0
  %357 = vmatpush.msra.mxu0 0.0
  %358 = vmatpush.msra.mxu0 %v147
  %359 = vmatmul.f32.gmra.mxu0 %v321
  %v360 = vpop.f32.mrf.mxu0
  %v361 = vadd.f32 0.0, %v360
  %362 = vdwg.mxu0
  %363 = vmatpush.msra.mxu0 0.0
  %364 = vmatpush.msra.mxu0 0.0
  %365 = vmatpush.msra.mxu0 0.0
  %366 = vmatpush.msra.mxu0 0.0
  %367 = vmatpush.msra.mxu0 0.0
  %368 = vmatpush.msra.mxu0 0.0
  %369 = vmatpush.msra.mxu0 0.0
  %370 = vmatpush.msra.mxu0 0.0
  %371 = vmatpush.msra.mxu0 0.0
  %372 = vmatpush.msra.mxu0 0.0
  %373 = vmatpush.msra.mxu0 0.0
  %374 = vmatpush.msra.mxu0 0.0
  %375 = vmatpush.msra.mxu0 0.0
  %376 = vmatpush.msra.mxu0 0.0
  %377 = vmatpush.msra.mxu0 0.0
  %378 = vmatpush.msra.mxu0 %v148
  %379 = vmatmul.f32.gmra.mxu0 %v321
  %v380 = vpop.f32.mrf.mxu0
  %v381 = vadd.f32 0.0, %v380
  %382 = vdwg.mxu0
  %383 = vmatpush.msra.mxu0 0.0
  %384 = vmatpush.msra.mxu0 0.0
  %385 = vmatpush.msra.mxu0 0.0
  %386 = vmatpush.msra.mxu0 0.0
  %387 = vmatpush.msra.mxu0 0.0
  %388 = vmatpush.msra.mxu0 0.0
  %389 = vmatpush.msra.mxu0 0.0
  %390 = vmatpush.msra.mxu0 0.0
  %391 = vmatpush.msra.mxu0 0.0
  %392 = vmatpush.msra.mxu0 0.0
  %393 = vmatpush.msra.mxu0 0.0
  %394 = vmatpush.msra.mxu0 0.0
  %395 = vmatpush.msra.mxu0 0.0
  %396 = vmatpush.msra.mxu0 0.0
  %397 = vmatpush.msra.mxu0 0.0
  %398 = vmatpush.msra.mxu0 %v149
  %399 = vmatmul.f32.gmra.mxu0 %v321
  %v400 = vpop.f32.mrf.mxu0
  %v401 = vadd.f32 0.0, %v400
  %402 = vdwg.mxu0
  %v403 = vadd.f32 %v257, %v341
  %v404 = vadd.f32 %v277, %v361
  %v405 = vadd.f32 %v297, %v381
  %v406 = vadd.f32 %v317, %v401
  %v407 = vmax.f32 %v403, 0.0
  %v408 = vmax.f32 %v404, 0.0
  %v409 = vmax.f32 %v405, 0.0
  %v410 = vmax.f32 %v406, 0.0
  %411 = vrot.lane.b32.xlu0 %v407, 1
  %v412 = vpop.permute.xlu0 %411
  %413 = vrot.lane.b32.xlu0 %v408, 1
  %v414 = vpop.permute.xlu0 %413
  %415 = vrot.lane.b32.xlu0 %v409, 1
  %v416 = vpop.permute.xlu0 %415
  %417 = vrot.lane.b32.xlu0 %v410, 1
  %v418 = vpop.permute.xlu0 %417
  %v419 = vsel %vm25, %v416, %v418
  %v420 = vsel %vm25, %v414, %v416
  %v421 = vsel %vm25, %v412, %v414
  %v422 = vsel %vm25, %v418, %v412
  %v423 = vmul.f32 %v422, %v101
  %v424 = vmul.f32 %v421, %v102
  %v425 = vmul.f32 %v420, %v103
  %v426 = vmul.f32 %v419, %v104
  %427 = vrot.lane.b32.xlu0 %v407, 127
  %v428 = vpop.permute.xlu0 %427
  %429 = vrot.lane.b32.xlu0 %v408, 127
  %v430 = vpop.permute.xlu0 %429
  %431 = vrot.lane.b32.xlu0 %v409, 127
  %v432 = vpop.permute.xlu0 %431
  %433 = vrot.lane.b32.xlu0 %v410, 127
  %v434 = vpop.permute.xlu0 %433
  %v435 = vsel %vm117, %v432, %v434
  %v436 = vsel %vm117, %v430, %v432
  %v437 = vsel %vm117, %v428, %v430
  %v438 = vsel %vm117, %v434, %v428
  %v439 = vmul.f32 %v437, %v142
  %v440 = vmul.f32 %v436, %v143
  %v441 = vmul.f32 %v435, %v144
  %v442 = vmul.f32 %v438, %v145
  %v443 = vld [vmem:[%s1 + $0x18] sm:$0xff]
  %v445 = vsel %vm152, %v443, 0
  %447 = vmatpush.msra.mxu0 0.0
  %448 = vmatpush.msra.mxu0 0.0
  %449 = vmatpush.msra.mxu0 0.0
  %450 = vmatpush.msra.mxu0 0.0
  %451 = vmatpush.msra.mxu0 0.0
  %452 = vmatpush.msra.mxu0 0.0
  %453 = vmatpush.msra.mxu0 0.0
  %454 = vmatpush.msra.mxu0 0.0
  %455 = vmatpush.msra.mxu0 0.0
  %456 = vmatpush.msra.mxu0 0.0
  %457 = vmatpush.msra.mxu0 0.0
  %458 = vmatpush.msra.mxu0 0.0
  %459 = vmatpush.msra.mxu0 0.0
  %460 = vmatpush.msra.mxu0 0.0
  %461 = vmatpush.msra.mxu0 0.0
  %462 = vmatpush.msra.mxu0 %v423
  %463 = vmatmul.f32.gmra.mxu0 %v445
  %v464 = vpop.f32.mrf.mxu0
  %v465 = vadd.f32 0.0, %v464
  %466 = vdwg.mxu0
  %467 = vmatpush.msra.mxu0 0.0
  %468 = vmatpush.msra.mxu0 0.0
  %469 = vmatpush.msra.mxu0 0.0
  %470 = vmatpush.msra.mxu0 0.0
  %471 = vmatpush.msra.mxu0 0.0
  %472 = vmatpush.msra.mxu0 0.0
  %473 = vmatpush.msra.mxu0 0.0
  %474 = vmatpush.msra.mxu0 0.0
  %475 = vmatpush.msra.mxu0 0.0
  %476 = vmatpush.msra.mxu0 0.0
  %477 = vmatpush.msra.mxu0 0.0
  %478 = vmatpush.msra.mxu0 0.0
  %479 = vmatpush.msra.mxu0 0.0
  %480 = vmatpush.msra.mxu0 0.0
  %481 = vmatpush.msra.mxu0 0.0
  %482 = vmatpush.msra.mxu0 %v424
  %483 = vmatmul.f32.gmra.mxu0 %v445
  %v484 = vpop.f32.mrf.mxu0
  %v485 = vadd.f32 0.0, %v484
  %486 = vdwg.mxu0
  %487 = vmatpush.msra.mxu0 0.0
  %488 = vmatpush.msra.mxu0 0.0
  %489 = vmatpush.msra.mxu0 0.0
  %490 = vmatpush.msra.mxu0 0.0
  %491 = vmatpush.msra.mxu0 0.0
  %492 = vmatpush.msra.mxu0 0.0
  %493 = vmatpush.msra.mxu0 0.0
  %494 = vmatpush.msra.mxu0 0.0
  %495 = vmatpush.msra.mxu0 0.0
  %496 = vmatpush.msra.mxu0 0.0
  %497 = vmatpush.msra.mxu0 0.0
  %498 = vmatpush.msra.mxu0 0.0
  %499 = vmatpush.msra.mxu0 0.0
  %500 = vmatpush.msra.mxu0 0.0
  %501 = vmatpush.msra.mxu0 0.0
  %502 = vmatpush.msra.mxu0 %v425
  %503 = vmatmul.f32.gmra.mxu0 %v445
  %v504 = vpop.f32.mrf.mxu0
  %v505 = vadd.f32 0.0, %v504
  %506 = vdwg.mxu0
  %507 = vmatpush.msra.mxu0 0.0
  %508 = vmatpush.msra.mxu0 0.0
  %509 = vmatpush.msra.mxu0 0.0
  %510 = vmatpush.msra.mxu0 0.0
  %511 = vmatpush.msra.mxu0 0.0
  %512 = vmatpush.msra.mxu0 0.0
  %513 = vmatpush.msra.mxu0 0.0
  %514 = vmatpush.msra.mxu0 0.0
  %515 = vmatpush.msra.mxu0 0.0
  %516 = vmatpush.msra.mxu0 0.0
  %517 = vmatpush.msra.mxu0 0.0
  %518 = vmatpush.msra.mxu0 0.0
  %519 = vmatpush.msra.mxu0 0.0
  %520 = vmatpush.msra.mxu0 0.0
  %521 = vmatpush.msra.mxu0 0.0
  %522 = vmatpush.msra.mxu0 %v426
  %523 = vmatmul.f32.gmra.mxu0 %v445
  %v524 = vpop.f32.mrf.mxu0
  %v525 = vadd.f32 0.0, %v524
  %526 = vdwg.mxu0
  %v527 = vadd.f32 %v407, %v465
  %v528 = vadd.f32 %v408, %v485
  %v529 = vadd.f32 %v409, %v505
  %v530 = vadd.f32 %v410, %v525
  %v531 = vld [vmem:[%s1 + $0x20] sm:$0xff]
  %v533 = vsel %vm152, %v531, 0
  %535 = vmatpush.msra.mxu0 0.0
  %536 = vmatpush.msra.mxu0 0.0
  %537 = vmatpush.msra.mxu0 0.0
  %538 = vmatpush.msra.mxu0 0.0
  %539 = vmatpush.msra.mxu0 0.0
  %540 = vmatpush.msra.mxu0 0.0
  %541 = vmatpush.msra.mxu0 0.0
  %542 = vmatpush.msra.mxu0 0.0
  %543 = vmatpush.msra.mxu0 0.0
  %544 = vmatpush.msra.mxu0 0.0
  %545 = vmatpush.msra.mxu0 0.0
  %546 = vmatpush.msra.mxu0 0.0
  %547 = vmatpush.msra.mxu0 0.0
  %548 = vmatpush.msra.mxu0 0.0
  %549 = vmatpush.msra.mxu0 0.0
  %550 = vmatpush.msra.mxu0 %v407
  %551 = vmatmul.f32.gmra.mxu0 %v533
  %v552 = vpop.f32.mrf.mxu0
  %v553 = vadd.f32 0.0, %v552
  %554 = vdwg.mxu0
  %555 = vmatpush.msra.mxu0 0.0
  %556 = vmatpush.msra.mxu0 0.0
  %557 = vmatpush.msra.mxu0 0.0
  %558 = vmatpush.msra.mxu0 0.0
  %559 = vmatpush.msra.mxu0 0.0
  %560 = vmatpush.msra.mxu0 0.0
  %561 = vmatpush.msra.mxu0 0.0
  %562 = vmatpush.msra.mxu0 0.0
  %563 = vmatpush.msra.mxu0 0.0
  %564 = vmatpush.msra.mxu0 0.0
  %565 = vmatpush.msra.mxu0 0.0
  %566 = vmatpush.msra.mxu0 0.0
  %567 = vmatpush.msra.mxu0 0.0
  %568 = vmatpush.msra.mxu0 0.0
  %569 = vmatpush.msra.mxu0 0.0
  %570 = vmatpush.msra.mxu0 %v408
  %571 = vmatmul.f32.gmra.mxu0 %v533
  %v572 = vpop.f32.mrf.mxu0
  %v573 = vadd.f32 0.0, %v572
  %574 = vdwg.mxu0
  %575 = vmatpush.msra.mxu0 0.0
  %576 = vmatpush.msra.mxu0 0.0
  %577 = vmatpush.msra.mxu0 0.0
  %578 = vmatpush.msra.mxu0 0.0
  %579 = vmatpush.msra.mxu0 0.0
  %580 = vmatpush.msra.mxu0 0.0
  %581 = vmatpush.msra.mxu0 0.0
  %582 = vmatpush.msra.mxu0 0.0
  %583 = vmatpush.msra.mxu0 0.0
  %584 = vmatpush.msra.mxu0 0.0
  %585 = vmatpush.msra.mxu0 0.0
  %586 = vmatpush.msra.mxu0 0.0
  %587 = vmatpush.msra.mxu0 0.0
  %588 = vmatpush.msra.mxu0 0.0
  %589 = vmatpush.msra.mxu0 0.0
  %590 = vmatpush.msra.mxu0 %v409
  %591 = vmatmul.f32.gmra.mxu0 %v533
  %v592 = vpop.f32.mrf.mxu0
  %v593 = vadd.f32 0.0, %v592
  %594 = vdwg.mxu0
  %595 = vmatpush.msra.mxu0 0.0
  %596 = vmatpush.msra.mxu0 0.0
  %597 = vmatpush.msra.mxu0 0.0
  %598 = vmatpush.msra.mxu0 0.0
  %599 = vmatpush.msra.mxu0 0.0
  %600 = vmatpush.msra.mxu0 0.0
  %601 = vmatpush.msra.mxu0 0.0
  %602 = vmatpush.msra.mxu0 0.0
  %603 = vmatpush.msra.mxu0 0.0
  %604 = vmatpush.msra.mxu0 0.0
  %605 = vmatpush.msra.mxu0 0.0
  %606 = vmatpush.msra.mxu0 0.0
  %607 = vmatpush.msra.mxu0 0.0
  %608 = vmatpush.msra.mxu0 0.0
  %609 = vmatpush.msra.mxu0 0.0
  %610 = vmatpush.msra.mxu0 %v410
  %611 = vmatmul.f32.gmra.mxu0 %v533
  %v612 = vpop.f32.mrf.mxu0
  %v613 = vadd.f32 0.0, %v612
  %614 = vdwg.mxu0
  %v615 = vadd.f32 %v527, %v553
  %v616 = vadd.f32 %v528, %v573
  %v617 = vadd.f32 %v529, %v593
  %v618 = vadd.f32 %v530, %v613
  %v619 = vld [vmem:[%s1 + $0x28] sm:$0xff]
  %v621 = vsel %vm152, %v619, 0
  %623 = vmatpush.msra.mxu0 0.0
  %624 = vmatpush.msra.mxu0 0.0
  %625 = vmatpush.msra.mxu0 0.0
  %626 = vmatpush.msra.mxu0 0.0
  %627 = vmatpush.msra.mxu0 0.0
  %628 = vmatpush.msra.mxu0 0.0
  %629 = vmatpush.msra.mxu0 0.0
  %630 = vmatpush.msra.mxu0 0.0
  %631 = vmatpush.msra.mxu0 0.0
  %632 = vmatpush.msra.mxu0 0.0
  %633 = vmatpush.msra.mxu0 0.0
  %634 = vmatpush.msra.mxu0 0.0
  %635 = vmatpush.msra.mxu0 0.0
  %636 = vmatpush.msra.mxu0 0.0
  %637 = vmatpush.msra.mxu0 0.0
  %638 = vmatpush.msra.mxu0 %v439
  %639 = vmatmul.f32.gmra.mxu0 %v621
  %v640 = vpop.f32.mrf.mxu0
  %v641 = vadd.f32 0.0, %v640
  %642 = vdwg.mxu0
  %643 = vmatpush.msra.mxu0 0.0
  %644 = vmatpush.msra.mxu0 0.0
  %645 = vmatpush.msra.mxu0 0.0
  %646 = vmatpush.msra.mxu0 0.0
  %647 = vmatpush.msra.mxu0 0.0
  %648 = vmatpush.msra.mxu0 0.0
  %649 = vmatpush.msra.mxu0 0.0
  %650 = vmatpush.msra.mxu0 0.0
  %651 = vmatpush.msra.mxu0 0.0
  %652 = vmatpush.msra.mxu0 0.0
  %653 = vmatpush.msra.mxu0 0.0
  %654 = vmatpush.msra.mxu0 0.0
  %655 = vmatpush.msra.mxu0 0.0
  %656 = vmatpush.msra.mxu0 0.0
  %657 = vmatpush.msra.mxu0 0.0
  %658 = vmatpush.msra.mxu0 %v440
  %659 = vmatmul.f32.gmra.mxu0 %v621
  %v660 = vpop.f32.mrf.mxu0
  %v661 = vadd.f32 0.0, %v660
  %662 = vdwg.mxu0
  %663 = vmatpush.msra.mxu0 0.0
  %664 = vmatpush.msra.mxu0 0.0
  %665 = vmatpush.msra.mxu0 0.0
  %666 = vmatpush.msra.mxu0 0.0
  %667 = vmatpush.msra.mxu0 0.0
  %668 = vmatpush.msra.mxu0 0.0
  %669 = vmatpush.msra.mxu0 0.0
  %670 = vmatpush.msra.mxu0 0.0
  %671 = vmatpush.msra.mxu0 0.0
  %672 = vmatpush.msra.mxu0 0.0
  %673 = vmatpush.msra.mxu0 0.0
  %674 = vmatpush.msra.mxu0 0.0
  %675 = vmatpush.msra.mxu0 0.0
  %676 = vmatpush.msra.mxu0 0.0
  %677 = vmatpush.msra.mxu0 0.0
  %678 = vmatpush.msra.mxu0 %v441
  %679 = vmatmul.f32.gmra.mxu0 %v621
  %v680 = vpop.f32.mrf.mxu0
  %v681 = vadd.f32 0.0, %v680
  %682 = vdwg.mxu0
  %683 = vmatpush.msra.mxu0 0.0
  %684 = vmatpush.msra.mxu0 0.0
  %685 = vmatpush.msra.mxu0 0.0
  %686 = vmatpush.msra.mxu0 0.0
  %687 = vmatpush.msra.mxu0 0.0
  %688 = vmatpush.msra.mxu0 0.0
  %689 = vmatpush.msra.mxu0 0.0
  %690 = vmatpush.msra.mxu0 0.0
  %691 = vmatpush.msra.mxu0 0.0
  %692 = vmatpush.msra.mxu0 0.0
  %693 = vmatpush.msra.mxu0 0.0
  %694 = vmatpush.msra.mxu0 0.0
  %695 = vmatpush.msra.mxu0 0.0
  %696 = vmatpush.msra.mxu0 0.0
  %697 = vmatpush.msra.mxu0 0.0
  %698 = vmatpush.msra.mxu0 %v442
  %699 = vmatmul.f32.gmra.mxu0 %v621
  %v700 = vpop.f32.mrf.mxu0
  %v701 = vadd.f32 0.0, %v700
  %702 = vdwg.mxu0
  %v703 = vadd.f32 %v615, %v641
  %v704 = vadd.f32 %v616, %v661
  %v705 = vadd.f32 %v617, %v681
  %v706 = vadd.f32 %v618, %v701
  %v707 = vld [vmem:[%s1 + $0x30] sm:$0xff]
  %v709 = vsel %vm152, %v707, 0
  %711 = vmatpush.msra.mxu0 0.0
  %712 = vmatpush.msra.mxu0 0.0
  %713 = vmatpush.msra.mxu0 0.0
  %714 = vmatpush.msra.mxu0 0.0
  %715 = vmatpush.msra.mxu0 0.0
  %716 = vmatpush.msra.mxu0 0.0
  %717 = vmatpush.msra.mxu0 0.0
  %718 = vmatpush.msra.mxu0 0.0
  %719 = vmatpush.msra.mxu0 0.0
  %720 = vmatpush.msra.mxu0 0.0
  %721 = vmatpush.msra.mxu0 0.0
  %722 = vmatpush.msra.mxu0 0.0
  %723 = vmatpush.msra.mxu0 0.0
  %724 = vmatpush.msra.mxu0 0.0
  %725 = vmatpush.msra.mxu0 0.0
  %726 = vmatpush.msra.mxu0 %v423
  %727 = vmatmul.f32.gmra.mxu0 %v709
  %v728 = vpop.f32.mrf.mxu0
  %v729 = vadd.f32 0.0, %v728
  %730 = vdwg.mxu0
  %731 = vmatpush.msra.mxu0 0.0
  %732 = vmatpush.msra.mxu0 0.0
  %733 = vmatpush.msra.mxu0 0.0
  %734 = vmatpush.msra.mxu0 0.0
  %735 = vmatpush.msra.mxu0 0.0
  %736 = vmatpush.msra.mxu0 0.0
  %737 = vmatpush.msra.mxu0 0.0
  %738 = vmatpush.msra.mxu0 0.0
  %739 = vmatpush.msra.mxu0 0.0
  %740 = vmatpush.msra.mxu0 0.0
  %741 = vmatpush.msra.mxu0 0.0
  %742 = vmatpush.msra.mxu0 0.0
  %743 = vmatpush.msra.mxu0 0.0
  %744 = vmatpush.msra.mxu0 0.0
  %745 = vmatpush.msra.mxu0 0.0
  %746 = vmatpush.msra.mxu0 %v424
  %747 = vmatmul.f32.gmra.mxu0 %v709
  %v748 = vpop.f32.mrf.mxu0
  %v749 = vadd.f32 0.0, %v748
  %750 = vdwg.mxu0
  %751 = vmatpush.msra.mxu0 0.0
  %752 = vmatpush.msra.mxu0 0.0
  %753 = vmatpush.msra.mxu0 0.0
  %754 = vmatpush.msra.mxu0 0.0
  %755 = vmatpush.msra.mxu0 0.0
  %756 = vmatpush.msra.mxu0 0.0
  %757 = vmatpush.msra.mxu0 0.0
  %758 = vmatpush.msra.mxu0 0.0
  %759 = vmatpush.msra.mxu0 0.0
  %760 = vmatpush.msra.mxu0 0.0
  %761 = vmatpush.msra.mxu0 0.0
  %762 = vmatpush.msra.mxu0 0.0
  %763 = vmatpush.msra.mxu0 0.0
  %764 = vmatpush.msra.mxu0 0.0
  %765 = vmatpush.msra.mxu0 0.0
  %766 = vmatpush.msra.mxu0 %v425
  %767 = vmatmul.f32.gmra.mxu0 %v709
  %v768 = vpop.f32.mrf.mxu0
  %v769 = vadd.f32 0.0, %v768
  %770 = vdwg.mxu0
  %771 = vmatpush.msra.mxu0 0.0
  %772 = vmatpush.msra.mxu0 0.0
  %773 = vmatpush.msra.mxu0 0.0
  %774 = vmatpush.msra.mxu0 0.0
  %775 = vmatpush.msra.mxu0 0.0
  %776 = vmatpush.msra.mxu0 0.0
  %777 = vmatpush.msra.mxu0 0.0
  %778 = vmatpush.msra.mxu0 0.0
  %779 = vmatpush.msra.mxu0 0.0
  %780 = vmatpush.msra.mxu0 0.0
  %781 = vmatpush.msra.mxu0 0.0
  %782 = vmatpush.msra.mxu0 0.0
  %783 = vmatpush.msra.mxu0 0.0
  %784 = vmatpush.msra.mxu0 0.0
  %785 = vmatpush.msra.mxu0 0.0
  %786 = vmatpush.msra.mxu0 %v426
  %787 = vmatmul.f32.gmra.mxu0 %v709
  %v788 = vpop.f32.mrf.mxu0
  %v789 = vadd.f32 0.0, %v788
  %790 = vdwg.mxu0
  %v791 = vadd.f32 %v703, %v729
  %v792 = vadd.f32 %v704, %v749
  %v793 = vadd.f32 %v705, %v769
  %v794 = vadd.f32 %v706, %v789
  %v795 = vld [vmem:[%s1 + $0x38] sm:$0xff]
  %v797 = vsel %vm152, %v795, 0
  %799 = vmatpush.msra.mxu0 0.0
  %800 = vmatpush.msra.mxu0 0.0
  %801 = vmatpush.msra.mxu0 0.0
  %802 = vmatpush.msra.mxu0 0.0
  %803 = vmatpush.msra.mxu0 0.0
  %804 = vmatpush.msra.mxu0 0.0
  %805 = vmatpush.msra.mxu0 0.0
  %806 = vmatpush.msra.mxu0 0.0
  %807 = vmatpush.msra.mxu0 0.0
  %808 = vmatpush.msra.mxu0 0.0
  %809 = vmatpush.msra.mxu0 0.0
  %810 = vmatpush.msra.mxu0 0.0
  %811 = vmatpush.msra.mxu0 0.0
  %812 = vmatpush.msra.mxu0 0.0
  %813 = vmatpush.msra.mxu0 0.0
  %814 = vmatpush.msra.mxu0 %v407
  %815 = vmatmul.f32.gmra.mxu0 %v797
  %v816 = vpop.f32.mrf.mxu0
  %v817 = vadd.f32 0.0, %v816
  %818 = vdwg.mxu0
  %819 = vmatpush.msra.mxu0 0.0
  %820 = vmatpush.msra.mxu0 0.0
  %821 = vmatpush.msra.mxu0 0.0
  %822 = vmatpush.msra.mxu0 0.0
  %823 = vmatpush.msra.mxu0 0.0
  %824 = vmatpush.msra.mxu0 0.0
  %825 = vmatpush.msra.mxu0 0.0
  %826 = vmatpush.msra.mxu0 0.0
  %827 = vmatpush.msra.mxu0 0.0
  %828 = vmatpush.msra.mxu0 0.0
  %829 = vmatpush.msra.mxu0 0.0
  %830 = vmatpush.msra.mxu0 0.0
  %831 = vmatpush.msra.mxu0 0.0
  %832 = vmatpush.msra.mxu0 0.0
  %833 = vmatpush.msra.mxu0 0.0
  %834 = vmatpush.msra.mxu0 %v408
  %835 = vmatmul.f32.gmra.mxu0 %v797
  %v836 = vpop.f32.mrf.mxu0
  %v837 = vadd.f32 0.0, %v836
  %838 = vdwg.mxu0
  %839 = vmatpush.msra.mxu0 0.0
  %840 = vmatpush.msra.mxu0 0.0
  %841 = vmatpush.msra.mxu0 0.0
  %842 = vmatpush.msra.mxu0 0.0
  %843 = vmatpush.msra.mxu0 0.0
  %844 = vmatpush.msra.mxu0 0.0
  %845 = vmatpush.msra.mxu0 0.0
  %846 = vmatpush.msra.mxu0 0.0
  %847 = vmatpush.msra.mxu0 0.0
  %848 = vmatpush.msra.mxu0 0.0
  %849 = vmatpush.msra.mxu0 0.0
  %850 = vmatpush.msra.mxu0 0.0
  %851 = vmatpush.msra.mxu0 0.0
  %852 = vmatpush.msra.mxu0 0.0
  %853 = vmatpush.msra.mxu0 0.0
  %854 = vmatpush.msra.mxu0 %v409
  %855 = vmatmul.f32.gmra.mxu0 %v797
  %v856 = vpop.f32.mrf.mxu0
  %v857 = vadd.f32 0.0, %v856
  %858 = vdwg.mxu0
  %859 = vmatpush.msra.mxu0 0.0
  %860 = vmatpush.msra.mxu0 0.0
  %861 = vmatpush.msra.mxu0 0.0
  %862 = vmatpush.msra.mxu0 0.0
  %863 = vmatpush.msra.mxu0 0.0
  %864 = vmatpush.msra.mxu0 0.0
  %865 = vmatpush.msra.mxu0 0.0
  %866 = vmatpush.msra.mxu0 0.0
  %867 = vmatpush.msra.mxu0 0.0
  %868 = vmatpush.msra.mxu0 0.0
  %869 = vmatpush.msra.mxu0 0.0
  %870 = vmatpush.msra.mxu0 0.0
  %871 = vmatpush.msra.mxu0 0.0
  %872 = vmatpush.msra.mxu0 0.0
  %873 = vmatpush.msra.mxu0 0.0
  %874 = vmatpush.msra.mxu0 %v410
  %875 = vmatmul.f32.gmra.mxu0 %v797
  %v876 = vpop.f32.mrf.mxu0
  %v877 = vadd.f32 0.0, %v876
  %878 = vdwg.mxu0
  %v879 = vadd.f32 %v791, %v817
  %v880 = vadd.f32 %v792, %v837
  %v881 = vadd.f32 %v793, %v857
  %v882 = vadd.f32 %v794, %v877
  %v883 = vld [vmem:[%s1 + $0x40] sm:$0xff]
  %v885 = vsel %vm152, %v883, 0
  %887 = vmatpush.msra.mxu0 0.0
  %888 = vmatpush.msra.mxu0 0.0
  %889 = vmatpush.msra.mxu0 0.0
  %890 = vmatpush.msra.mxu0 0.0
  %891 = vmatpush.msra.mxu0 0.0
  %892 = vmatpush.msra.mxu0 0.0
  %893 = vmatpush.msra.mxu0 0.0
  %894 = vmatpush.msra.mxu0 0.0
  %895 = vmatpush.msra.mxu0 0.0
  %896 = vmatpush.msra.mxu0 0.0
  %897 = vmatpush.msra.mxu0 0.0
  %898 = vmatpush.msra.mxu0 0.0
  %899 = vmatpush.msra.mxu0 0.0
  %900 = vmatpush.msra.mxu0 0.0
  %901 = vmatpush.msra.mxu0 0.0
  %902 = vmatpush.msra.mxu0 %v439
  %903 = vmatmul.f32.gmra.mxu0 %v885
  %v904 = vpop.f32.mrf.mxu0
  %v905 = vadd.f32 0.0, %v904
  %906 = vdwg.mxu0
  %907 = vmatpush.msra.mxu0 0.0
  %908 = vmatpush.msra.mxu0 0.0
  %909 = vmatpush.msra.mxu0 0.0
  %910 = vmatpush.msra.mxu0 0.0
  %911 = vmatpush.msra.mxu0 0.0
  %912 = vmatpush.msra.mxu0 0.0
  %913 = vmatpush.msra.mxu0 0.0
  %914 = vmatpush.msra.mxu0 0.0
  %915 = vmatpush.msra.mxu0 0.0
  %916 = vmatpush.msra.mxu0 0.0
  %917 = vmatpush.msra.mxu0 0.0
  %918 = vmatpush.msra.mxu0 0.0
  %919 = vmatpush.msra.mxu0 0.0
  %920 = vmatpush.msra.mxu0 0.0
  %921 = vmatpush.msra.mxu0 0.0
  %922 = vmatpush.msra.mxu0 %v440
  %923 = vmatmul.f32.gmra.mxu0 %v885
  %v924 = vpop.f32.mrf.mxu0
  %v925 = vadd.f32 0.0, %v924
  %926 = vdwg.mxu0
  %927 = vmatpush.msra.mxu0 0.0
  %928 = vmatpush.msra.mxu0 0.0
  %929 = vmatpush.msra.mxu0 0.0
  %930 = vmatpush.msra.mxu0 0.0
  %931 = vmatpush.msra.mxu0 0.0
  %932 = vmatpush.msra.mxu0 0.0
  %933 = vmatpush.msra.mxu0 0.0
  %934 = vmatpush.msra.mxu0 0.0
  %935 = vmatpush.msra.mxu0 0.0
  %936 = vmatpush.msra.mxu0 0.0
  %937 = vmatpush.msra.mxu0 0.0
  %938 = vmatpush.msra.mxu0 0.0
  %939 = vmatpush.msra.mxu0 0.0
  %940 = vmatpush.msra.mxu0 0.0
  %941 = vmatpush.msra.mxu0 0.0
  %942 = vmatpush.msra.mxu0 %v441
  %943 = vmatmul.f32.gmra.mxu0 %v885
  %v944 = vpop.f32.mrf.mxu0
  %v945 = vadd.f32 0.0, %v944
  %946 = vdwg.mxu0
  %947 = vmatpush.msra.mxu0 0.0
  %948 = vmatpush.msra.mxu0 0.0
  %949 = vmatpush.msra.mxu0 0.0
  %950 = vmatpush.msra.mxu0 0.0
  %951 = vmatpush.msra.mxu0 0.0
  %952 = vmatpush.msra.mxu0 0.0
  %953 = vmatpush.msra.mxu0 0.0
  %954 = vmatpush.msra.mxu0 0.0
  %955 = vmatpush.msra.mxu0 0.0
  %956 = vmatpush.msra.mxu0 0.0
  %957 = vmatpush.msra.mxu0 0.0
  %958 = vmatpush.msra.mxu0 0.0
  %959 = vmatpush.msra.mxu0 0.0
  %960 = vmatpush.msra.mxu0 0.0
  %961 = vmatpush.msra.mxu0 0.0
  %962 = vmatpush.msra.mxu0 %v442
  %963 = vmatmul.f32.gmra.mxu0 %v885
  %v964 = vpop.f32.mrf.mxu0
  %v965 = vadd.f32 0.0, %v964
  %966 = vdwg.mxu0
  %v967 = vadd.f32 %v879, %v905
  %v968 = vadd.f32 %v880, %v925
  %v969 = vadd.f32 %v881, %v945
  %v970 = vadd.f32 %v882, %v965
  %971 = vrot.lane.b32.xlu0 %v967, 1
  %v972 = vpop.permute.xlu0 %971
  %973 = vrot.lane.b32.xlu0 %v968, 1
  %v974 = vpop.permute.xlu0 %973
  %975 = vrot.lane.b32.xlu0 %v969, 1
  %v976 = vpop.permute.xlu0 %975
  %977 = vrot.lane.b32.xlu0 %v970, 1
  %v978 = vpop.permute.xlu0 %977
  %v979 = vsel %vm25, %v976, %v978
  %v980 = vsel %vm25, %v974, %v976
  %v981 = vsel %vm25, %v972, %v974
  %v982 = vsel %vm25, %v978, %v972
  %v983 = vmul.f32 %v982, %v101
  %v984 = vmul.f32 %v981, %v102
  %v985 = vmul.f32 %v980, %v103
  %v986 = vmul.f32 %v979, %v104
  %987 = vrot.lane.b32.xlu0 %v967, 127
  %v988 = vpop.permute.xlu0 %987
  %989 = vrot.lane.b32.xlu0 %v968, 127
  %v990 = vpop.permute.xlu0 %989
  %991 = vrot.lane.b32.xlu0 %v969, 127
  %v992 = vpop.permute.xlu0 %991
  %993 = vrot.lane.b32.xlu0 %v970, 127
  %v994 = vpop.permute.xlu0 %993
  %v995 = vsel %vm117, %v992, %v994
  %v996 = vsel %vm117, %v990, %v992
  %v997 = vsel %vm117, %v988, %v990
  %v998 = vsel %vm117, %v994, %v988
  %v999 = vmul.f32 %v997, %v142
  %v1000 = vmul.f32 %v996, %v143
  %v1001 = vmul.f32 %v995, %v144
  %v1002 = vmul.f32 %v998, %v145
  %v1003 = vld [vmem:[%s1 + $0x48] sm:$0xff]
  %v1004 = vld [vmem:[%s1 + $0x50] sm:$0xff]
  %v1006 = vsel %vm152, %v1004, 0
  %1008 = vmatpush.msra.mxu0 0.0
  %1009 = vmatpush.msra.mxu0 0.0
  %1010 = vmatpush.msra.mxu0 0.0
  %1011 = vmatpush.msra.mxu0 0.0
  %1012 = vmatpush.msra.mxu0 0.0
  %1013 = vmatpush.msra.mxu0 0.0
  %1014 = vmatpush.msra.mxu0 0.0
  %1015 = vmatpush.msra.mxu0 0.0
  %1016 = vmatpush.msra.mxu0 0.0
  %1017 = vmatpush.msra.mxu0 0.0
  %1018 = vmatpush.msra.mxu0 0.0
  %1019 = vmatpush.msra.mxu0 0.0
  %1020 = vmatpush.msra.mxu0 0.0
  %1021 = vmatpush.msra.mxu0 0.0
  %1022 = vmatpush.msra.mxu0 0.0
  %1023 = vmatpush.msra.mxu0 %v967
  %1024 = vmatmul.f32.gmra.mxu0 %v1006
  %v1025 = vpop.f32.mrf.mxu0
  %v1026 = vadd.f32 0.0, %v1025
  %1027 = vdwg.mxu0
  %1028 = vmatpush.msra.mxu0 0.0
  %1029 = vmatpush.msra.mxu0 0.0
  %1030 = vmatpush.msra.mxu0 0.0
  %1031 = vmatpush.msra.mxu0 0.0
  %1032 = vmatpush.msra.mxu0 0.0
  %1033 = vmatpush.msra.mxu0 0.0
  %1034 = vmatpush.msra.mxu0 0.0
  %1035 = vmatpush.msra.mxu0 0.0
  %1036 = vmatpush.msra.mxu0 0.0
  %1037 = vmatpush.msra.mxu0 0.0
  %1038 = vmatpush.msra.mxu0 0.0
  %1039 = vmatpush.msra.mxu0 0.0
  %1040 = vmatpush.msra.mxu0 0.0
  %1041 = vmatpush.msra.mxu0 0.0
  %1042 = vmatpush.msra.mxu0 0.0
  %1043 = vmatpush.msra.mxu0 %v968
  %1044 = vmatmul.f32.gmra.mxu0 %v1006
  %v1045 = vpop.f32.mrf.mxu0
  %v1046 = vadd.f32 0.0, %v1045
  %1047 = vdwg.mxu0
  %1048 = vmatpush.msra.mxu0 0.0
  %1049 = vmatpush.msra.mxu0 0.0
  %1050 = vmatpush.msra.mxu0 0.0
  %1051 = vmatpush.msra.mxu0 0.0
  %1052 = vmatpush.msra.mxu0 0.0
  %1053 = vmatpush.msra.mxu0 0.0
  %1054 = vmatpush.msra.mxu0 0.0
  %1055 = vmatpush.msra.mxu0 0.0
  %1056 = vmatpush.msra.mxu0 0.0
  %1057 = vmatpush.msra.mxu0 0.0
  %1058 = vmatpush.msra.mxu0 0.0
  %1059 = vmatpush.msra.mxu0 0.0
  %1060 = vmatpush.msra.mxu0 0.0
  %1061 = vmatpush.msra.mxu0 0.0
  %1062 = vmatpush.msra.mxu0 0.0
  %1063 = vmatpush.msra.mxu0 %v969
  %1064 = vmatmul.f32.gmra.mxu0 %v1006
  %v1065 = vpop.f32.mrf.mxu0
  %v1066 = vadd.f32 0.0, %v1065
  %1067 = vdwg.mxu0
  %1068 = vmatpush.msra.mxu0 0.0
  %1069 = vmatpush.msra.mxu0 0.0
  %1070 = vmatpush.msra.mxu0 0.0
  %1071 = vmatpush.msra.mxu0 0.0
  %1072 = vmatpush.msra.mxu0 0.0
  %1073 = vmatpush.msra.mxu0 0.0
  %1074 = vmatpush.msra.mxu0 0.0
  %1075 = vmatpush.msra.mxu0 0.0
  %1076 = vmatpush.msra.mxu0 0.0
  %1077 = vmatpush.msra.mxu0 0.0
  %1078 = vmatpush.msra.mxu0 0.0
  %1079 = vmatpush.msra.mxu0 0.0
  %1080 = vmatpush.msra.mxu0 0.0
  %1081 = vmatpush.msra.mxu0 0.0
  %1082 = vmatpush.msra.mxu0 0.0
  %1083 = vmatpush.msra.mxu0 %v970
  %1084 = vmatmul.f32.gmra.mxu0 %v1006
  %v1085 = vpop.f32.mrf.mxu0
  %v1086 = vadd.f32 0.0, %v1085
  %1087 = vdwg.mxu0
  %v1089 = vsel %vm152, %v1003, 0
  %1091 = vmatpush.msra.mxu0 0.0
  %1092 = vmatpush.msra.mxu0 0.0
  %1093 = vmatpush.msra.mxu0 0.0
  %1094 = vmatpush.msra.mxu0 0.0
  %1095 = vmatpush.msra.mxu0 0.0
  %1096 = vmatpush.msra.mxu0 0.0
  %1097 = vmatpush.msra.mxu0 0.0
  %1098 = vmatpush.msra.mxu0 0.0
  %1099 = vmatpush.msra.mxu0 0.0
  %1100 = vmatpush.msra.mxu0 0.0
  %1101 = vmatpush.msra.mxu0 0.0
  %1102 = vmatpush.msra.mxu0 0.0
  %1103 = vmatpush.msra.mxu0 0.0
  %1104 = vmatpush.msra.mxu0 0.0
  %1105 = vmatpush.msra.mxu0 0.0
  %1106 = vmatpush.msra.mxu0 %v983
  %1107 = vmatmul.f32.gmra.mxu0 %v1089
  %v1108 = vpop.f32.mrf.mxu0
  %v1109 = vadd.f32 %v1026, %v1108
  %1110 = vdwg.mxu0
  %1111 = vmatpush.msra.mxu0 0.0
  %1112 = vmatpush.msra.mxu0 0.0
  %1113 = vmatpush.msra.mxu0 0.0
  %1114 = vmatpush.msra.mxu0 0.0
  %1115 = vmatpush.msra.mxu0 0.0
  %1116 = vmatpush.msra.mxu0 0.0
  %1117 = vmatpush.msra.mxu0 0.0
  %1118 = vmatpush.msra.mxu0 0.0
  %1119 = vmatpush.msra.mxu0 0.0
  %1120 = vmatpush.msra.mxu0 0.0
  %1121 = vmatpush.msra.mxu0 0.0
  %1122 = vmatpush.msra.mxu0 0.0
  %1123 = vmatpush.msra.mxu0 0.0
  %1124 = vmatpush.msra.mxu0 0.0
  %1125 = vmatpush.msra.mxu0 0.0
  %1126 = vmatpush.msra.mxu0 %v984
  %1127 = vmatmul.f32.gmra.mxu0 %v1089
  %v1128 = vpop.f32.mrf.mxu0
  %v1129 = vadd.f32 %v1046, %v1128
  %1130 = vdwg.mxu0
  %1131 = vmatpush.msra.mxu0 0.0
  %1132 = vmatpush.msra.mxu0 0.0
  %1133 = vmatpush.msra.mxu0 0.0
  %1134 = vmatpush.msra.mxu0 0.0
  %1135 = vmatpush.msra.mxu0 0.0
  %1136 = vmatpush.msra.mxu0 0.0
  %1137 = vmatpush.msra.mxu0 0.0
  %1138 = vmatpush.msra.mxu0 0.0
  %1139 = vmatpush.msra.mxu0 0.0
  %1140 = vmatpush.msra.mxu0 0.0
  %1141 = vmatpush.msra.mxu0 0.0
  %1142 = vmatpush.msra.mxu0 0.0
  %1143 = vmatpush.msra.mxu0 0.0
  %1144 = vmatpush.msra.mxu0 0.0
  %1145 = vmatpush.msra.mxu0 0.0
  %1146 = vmatpush.msra.mxu0 %v985
  %1147 = vmatmul.f32.gmra.mxu0 %v1089
  %v1148 = vpop.f32.mrf.mxu0
  %v1149 = vadd.f32 %v1066, %v1148
  %1150 = vdwg.mxu0
  %1151 = vmatpush.msra.mxu0 0.0
  %1152 = vmatpush.msra.mxu0 0.0
  %1153 = vmatpush.msra.mxu0 0.0
  %1154 = vmatpush.msra.mxu0 0.0
  %1155 = vmatpush.msra.mxu0 0.0
  %1156 = vmatpush.msra.mxu0 0.0
  %1157 = vmatpush.msra.mxu0 0.0
  %1158 = vmatpush.msra.mxu0 0.0
  %1159 = vmatpush.msra.mxu0 0.0
  %1160 = vmatpush.msra.mxu0 0.0
  %1161 = vmatpush.msra.mxu0 0.0
  %1162 = vmatpush.msra.mxu0 0.0
  %1163 = vmatpush.msra.mxu0 0.0
  %1164 = vmatpush.msra.mxu0 0.0
  %1165 = vmatpush.msra.mxu0 0.0
  %1166 = vmatpush.msra.mxu0 %v986
  %1167 = vmatmul.f32.gmra.mxu0 %v1089
  %v1168 = vpop.f32.mrf.mxu0
  %v1169 = vadd.f32 %v1086, %v1168
  %1170 = vdwg.mxu0
  %v1171 = vld [vmem:[%s1 + $0x58] sm:$0xff]
  %v1173 = vsel %vm152, %v1171, 0
  %1175 = vmatpush.msra.mxu0 0.0
  %1176 = vmatpush.msra.mxu0 0.0
  %1177 = vmatpush.msra.mxu0 0.0
  %1178 = vmatpush.msra.mxu0 0.0
  %1179 = vmatpush.msra.mxu0 0.0
  %1180 = vmatpush.msra.mxu0 0.0
  %1181 = vmatpush.msra.mxu0 0.0
  %1182 = vmatpush.msra.mxu0 0.0
  %1183 = vmatpush.msra.mxu0 0.0
  %1184 = vmatpush.msra.mxu0 0.0
  %1185 = vmatpush.msra.mxu0 0.0
  %1186 = vmatpush.msra.mxu0 0.0
  %1187 = vmatpush.msra.mxu0 0.0
  %1188 = vmatpush.msra.mxu0 0.0
  %1189 = vmatpush.msra.mxu0 0.0
  %1190 = vmatpush.msra.mxu0 %v999
  %1191 = vmatmul.f32.gmra.mxu0 %v1173
  %v1192 = vpop.f32.mrf.mxu0
  %v1193 = vadd.f32 0.0, %v1192
  %1194 = vdwg.mxu0
  %1195 = vmatpush.msra.mxu0 0.0
  %1196 = vmatpush.msra.mxu0 0.0
  %1197 = vmatpush.msra.mxu0 0.0
  %1198 = vmatpush.msra.mxu0 0.0
  %1199 = vmatpush.msra.mxu0 0.0
  %1200 = vmatpush.msra.mxu0 0.0
  %1201 = vmatpush.msra.mxu0 0.0
  %1202 = vmatpush.msra.mxu0 0.0
  %1203 = vmatpush.msra.mxu0 0.0
  %1204 = vmatpush.msra.mxu0 0.0
  %1205 = vmatpush.msra.mxu0 0.0
  %1206 = vmatpush.msra.mxu0 0.0
  %1207 = vmatpush.msra.mxu0 0.0
  %1208 = vmatpush.msra.mxu0 0.0
  %1209 = vmatpush.msra.mxu0 0.0
  %1210 = vmatpush.msra.mxu0 %v1000
  %1211 = vmatmul.f32.gmra.mxu0 %v1173
  %v1212 = vpop.f32.mrf.mxu0
  %v1213 = vadd.f32 0.0, %v1212
  %1214 = vdwg.mxu0
  %1215 = vmatpush.msra.mxu0 0.0
  %1216 = vmatpush.msra.mxu0 0.0
  %1217 = vmatpush.msra.mxu0 0.0
  %1218 = vmatpush.msra.mxu0 0.0
  %1219 = vmatpush.msra.mxu0 0.0
  %1220 = vmatpush.msra.mxu0 0.0
  %1221 = vmatpush.msra.mxu0 0.0
  %1222 = vmatpush.msra.mxu0 0.0
  %1223 = vmatpush.msra.mxu0 0.0
  %1224 = vmatpush.msra.mxu0 0.0
  %1225 = vmatpush.msra.mxu0 0.0
  %1226 = vmatpush.msra.mxu0 0.0
  %1227 = vmatpush.msra.mxu0 0.0
  %1228 = vmatpush.msra.mxu0 0.0
  %1229 = vmatpush.msra.mxu0 0.0
  %1230 = vmatpush.msra.mxu0 %v1001
  %1231 = vmatmul.f32.gmra.mxu0 %v1173
  %v1232 = vpop.f32.mrf.mxu0
  %v1233 = vadd.f32 0.0, %v1232
  %1234 = vdwg.mxu0
  %1235 = vmatpush.msra.mxu0 0.0
  %1236 = vmatpush.msra.mxu0 0.0
  %1237 = vmatpush.msra.mxu0 0.0
  %1238 = vmatpush.msra.mxu0 0.0
  %1239 = vmatpush.msra.mxu0 0.0
  %1240 = vmatpush.msra.mxu0 0.0
  %1241 = vmatpush.msra.mxu0 0.0
  %1242 = vmatpush.msra.mxu0 0.0
  %1243 = vmatpush.msra.mxu0 0.0
  %1244 = vmatpush.msra.mxu0 0.0
  %1245 = vmatpush.msra.mxu0 0.0
  %1246 = vmatpush.msra.mxu0 0.0
  %1247 = vmatpush.msra.mxu0 0.0
  %1248 = vmatpush.msra.mxu0 0.0
  %1249 = vmatpush.msra.mxu0 0.0
  %1250 = vmatpush.msra.mxu0 %v1002
  %1251 = vmatmul.f32.gmra.mxu0 %v1173
  %v1252 = vpop.f32.mrf.mxu0
  %v1253 = vadd.f32 0.0, %v1252
  %1254 = vdwg.mxu0
  %v1255 = vadd.f32 %v1109, %v1193
  %v1256 = vadd.f32 %v1129, %v1213
  %v1257 = vadd.f32 %v1149, %v1233
  %v1258 = vadd.f32 %v1169, %v1253
  %v1259 = vmax.f32 %v1255, 0.0
  %v1260 = vmax.f32 %v1256, 0.0
  %v1261 = vmax.f32 %v1257, 0.0
  %v1262 = vmax.f32 %v1258, 0.0
  %1263 = vst [vmem:[%s2] sm:$0xff] %v1259
  %1264 = vst [vmem:[%s2 + $0x8] sm:$0xff] %v1260
  %1265 = vst [vmem:[%s2 + $0x10] sm:$0xff] %v1261
  %1266 = vst [vmem:[%s2 + $0x18] sm:$0xff] %v1262
  // Predicated region
  $region10: #{autoencoder_forward.1} parent=0 // pred_check
    _
  $region11: #{autoencoder_forward.1} parent=0 // pred_check_branch
    %1268 = sbr.rel (0) target = $region13
  $region12: #{autoencoder_forward.1} parent=0 // pred_region
    _
  $region13: #{autoencoder_forward.1} parent=0 // pred_fallthru
    _
  // Predicated region
  $region14: #{autoencoder_forward.1} parent=0 // pred_check
    _
  $region15: #{autoencoder_forward.1} parent=0 // pred_check_branch
    %1270 = sbr.rel (0) target = $region17
  $region16: #{autoencoder_forward.1} parent=0 // pred_region
    _
  $region17: #{autoencoder_forward.1} parent=0 // pred_fallthru
    _

</llo_original>
